<compile_context>
chip_gen: v7x
topology: tpu7x:2x2x1
jax: 0.10.0
libtpu: 0.0.40
codegen_flags: <defaults>
</compile_context>

<pallas_src>
import math

import jax
import jax.numpy as jnp
from jax import lax
from jax.experimental import pallas as pl
from jax.experimental.pallas import tpu as pltpu  # noqa: F401  (kept for memory-space use if needed)


def _tree_fold(op, xs):
    """Balanced tree reduce (log2 depth instead of a serial chain)."""
    xs = list(xs)
    while len(xs) > 1:
        nxt = [op(xs[i], xs[i + 1]) for i in range(0, len(xs) - 1, 2)]
        if len(xs) % 2:
            nxt.append(xs[-1])
        xs = nxt
    return xs[0]


def mask_linear_kernel(idx_ref, xv_ref, w_ref, b_ref, o_ref):
    """All B rows computed in ONE invocation (no grid -> no per-step overhead).

    idx_ref: (B, K) int32 VMEM  scatter positions, one row per instance
    xv_ref : (B, K) f32   VMEM  squeezed x values, one row per instance
    w_ref  : (1, N) f32   VMEM  shared weight vector
    b_ref  : (1, O) f32   VMEM  shared bias
    o_ref  : (B, O) f32   VMEM  outputs, one contiguous store
    """
    bsz, k = idx_ref.shape
    n = w_ref.shape[-1]

    idxs = idx_ref[...]                         # (B, K) int32
    xvs = xv_ref[...]                           # (B, K) f32

    # torch negative-index semantics: mask[-i] wraps from the end.
    idxs = jnp.where(idxs < 0, idxs + n, idxs)
    # NOTE: idx >= in_features would raise in torch; here such slots simply
    # match no lane and are silently dropped.

    # ---- last-write-wins dedupe (torch `mask[idx] = x` with duplicates) ----
    # Keep slot j only if no later slot j' > j writes the same index; the kept
    # slot's value is exactly what torch leaves in the mask.  These are
    # K*(K-1)/2 tiny (B, 1) integer compares — far cheaper than the previous
    # K-deep (., N) max-tree of "winner" slots.
    cols_i = [idxs[:, j:j + 1] for j in range(k)]       # (B, 1) each
    cols_x = [xvs[:, j:j + 1] for j in range(k)]        # (B, 1) each
    x_eff = []
    for j in range(k):
        later_eq = [cols_i[j] == cols_i[jp] for jp in range(j + 1, k)]
        if later_eq:
            dup_later = _tree_fold(jnp.logical_or, later_eq)    # (B, 1) bool
            x_eff.append(jnp.where(dup_later, 0.0, cols_x[j]))
        else:
            x_eff.append(cols_x[j])

    # ---- scatter, vectorized over the sublane (batch) axis ----
    # One (B, N) lane iota; each slot contributes its (deduped) value on the
    # lanes equal to its index.  Unwritten lanes stay exactly zero.
    lane = lax.broadcasted_iota(jnp.int32, (bsz, n), 1)
    contribs = [jnp.where(lane == cols_i[j], x_eff[j], 0.0) for j in range(k)]
    mask = _tree_fold(jnp.add, contribs)                  # (B, N) f32

    # Tiny contraction: VPU multiply + XLU cross-lane reduce, one per row.
    out = jnp.sum(w_ref[...] * mask, axis=-1, keepdims=True)    # (B, 1)
    o_ref[...] = out + b_ref[...]                         # broadcast -> (B, O)
    # TODO(synk): for very small B*K a fully-scalar SMEM gather-MAC
    # (sum_j weight[idx_j] * x_j) could skip the N-lane mask entirely; and for
    # B >= ~128 the (B, N) mask should instead be fed to the MXU via jnp.dot.


def mask_linear_batched(xs, idxs, weight, bias):
    """B independent MaskLinear.forward calls sharing (weight, bias).

    xs   : (B, K), (B, K, 1), ... — each row squeezes to (K,)
    idxs : (B, K) integer scatter positions
    returns (B, out_features) float32
    """
    in_features = weight.shape[0]
    out_features = bias.shape[0]
    B = idxs.shape[0]
    K = idxs.shape[-1]

    xv = jnp.reshape(xs, (B, K)).astype(jnp.float32)       # per-row .squeeze()
    idx_i32 = jnp.reshape(idxs, (B, K)).astype(jnp.int32)
    w2 = weight.reshape(1, in_features).astype(jnp.float32)
    b2 = bias.reshape(1, out_features).astype(jnp.float32)

    # No grid: weight/bias (~1 KiB) and the (B, K) tables are trivially
    # VMEM-resident, so a single invocation handles the whole batch with one
    # DMA set and one coalesced output store.
    return pl.pallas_call(
        mask_linear_kernel,
        out_shape=jax.ShapeDtypeStruct((B, out_features), jnp.float32),
    )(idx_i32, xv, w2, b2)


def mask_linear(x, idx, weight, bias):
    """Single-call convenience wrapper (matches MaskLinear.forward exactly)."""
    out = mask_linear_batched(
        jnp.reshape(x, (1, -1)), jnp.reshape(idx, (1, -1)), weight, bias)
    return out.reshape(bias.shape[0])


if __name__ == "__main__":
    in_features = 256
    out_features = 1
    K = 8   # number of scattered entries (len(idx) == numel(x.squeeze()))
    B = 4   # batched MaskLinear invocations fused into one kernel invocation

    key = jax.random.PRNGKey(0)
    k_w, k_b, k_x, k_idx = jax.random.split(key, 4)

    # Deterministic parameter init mirroring reset_parameters():
    stdv = 1.0 / math.sqrt(in_features)
    weight = jax.random.uniform(
        k_w, (in_features,), jnp.float32, minval=-stdv, maxval=stdv)
    bias = jax.random.uniform(
        k_b, (out_features,), jnp.float32, minval=-stdv, maxval=stdv)

    # Example inputs: each x row is (K, 1) (squeezes to (K,)).
    xs = jax.random.normal(k_x, (B, K, 1), jnp.float32)
    idx_keys = jax.random.split(k_idx, B)
    idxs = jnp.stack([
        jax.random.choice(idx_keys[b], in_features, shape=(K,), replace=False)
        for b in range(B)
    ]).astype(jnp.int32)
    # Exercise torch's duplicate-index (last-write-wins) path on the last row.
    idxs = idxs.at[B - 1, 0].set(idxs[B - 1, K - 1])
    idxs = idxs.at[B - 1, 2].set(idxs[B - 1, 5])

    out_b = jax.block_until_ready(mask_linear_batched(xs, idxs, weight, bias))

    # Pure-JAX reference of the exact torch semantics: sequential writes give
    # deterministic last-write-wins even with duplicate indices.
    def ref_one(xv, idx):
        m = jnp.zeros((in_features,), jnp.float32)
        for j in range(K):
            m = m.at[idx[j]].set(xv[j])
        return jnp.dot(weight, m) + bias

    ref_b = jnp.stack([ref_one(xs[b].reshape(-1), idxs[b]) for b in range(B)])

    assert out_b.shape == (B, out_features)
    assert jnp.allclose(out_b, ref_b, atol=1e-5, rtol=1e-5), (out_b, ref_b)

    # Single-instance path (B == 1), including the duplicate-index row.
    out_1 = jax.block_until_ready(
        mask_linear(xs[B - 1], idxs[B - 1], weight, bias))
    assert out_1.shape == (out_features,)
    assert jnp.allclose(out_1, ref_b[B - 1], atol=1e-5, rtol=1e-5), (out_1, ref_b[B - 1])

    print("KERNEL_OK")
</pallas_src>

<mosaic_0001>
module attributes {stable_mosaic.version = 11 : i64} {
  func.func @mask_linear_kernel(%arg0: memref<4x8xi32, #tpu.memory_space<vmem>>, %arg1: memref<4x8xf32, #tpu.memory_space<vmem>>, %arg2: memref<1x256xf32, #tpu.memory_space<vmem>>, %arg3: memref<1x1xf32, #tpu.memory_space<vmem>>, %arg4: memref<4x1xf32, #tpu.memory_space<vmem>>) attributes {dimension_semantics = [], scalar_prefetch = 0 : i64, scratch_operands = 0 : i64, tpu.core_type = #tpu.core_type<tc>} {
    %c0 = arith.constant 0 : index
    %c0_0 = arith.constant 0 : index
    %0 = vector.load %arg0[%c0, %c0_0] : memref<4x8xi32, #tpu.memory_space<vmem>>, vector<4x8xi32>
    %c0_1 = arith.constant 0 : index
    %c0_2 = arith.constant 0 : index
    %1 = vector.load %arg1[%c0_1, %c0_2] : memref<4x8xf32, #tpu.memory_space<vmem>>, vector<4x8xf32>
    %c0_i32 = arith.constant 0 : i32
    %2 = vector.broadcast %c0_i32 : i32 to vector<4x8xi32>
    %3 = arith.cmpi slt, %0, %2 : vector<4x8xi32>
    %c256_i32 = arith.constant 256 : i32
    %4 = vector.broadcast %c256_i32 : i32 to vector<4x8xi32>
    %5 = arith.addi %0, %4 : vector<4x8xi32>
    %6 = arith.select %3, %5, %0 : vector<4x8xi1>, vector<4x8xi32>
    %7 = vector.extract_strided_slice %6 {offsets = [0, 0], sizes = [4, 1], strides = [1, 1]} : vector<4x8xi32> to vector<4x1xi32>
    %8 = vector.extract_strided_slice %6 {offsets = [0, 1], sizes = [4, 1], strides = [1, 1]} : vector<4x8xi32> to vector<4x1xi32>
    %9 = vector.extract_strided_slice %6 {offsets = [0, 2], sizes = [4, 1], strides = [1, 1]} : vector<4x8xi32> to vector<4x1xi32>
    %10 = vector.extract_strided_slice %6 {offsets = [0, 3], sizes = [4, 1], strides = [1, 1]} : vector<4x8xi32> to vector<4x1xi32>
    %11 = vector.extract_strided_slice %6 {offsets = [0, 4], sizes = [4, 1], strides = [1, 1]} : vector<4x8xi32> to vector<4x1xi32>
    %12 = vector.extract_strided_slice %6 {offsets = [0, 5], sizes = [4, 1], strides = [1, 1]} : vector<4x8xi32> to vector<4x1xi32>
    %13 = vector.extract_strided_slice %6 {offsets = [0, 6], sizes = [4, 1], strides = [1, 1]} : vector<4x8xi32> to vector<4x1xi32>
    %14 = vector.extract_strided_slice %6 {offsets = [0, 7], sizes = [4, 1], strides = [1, 1]} : vector<4x8xi32> to vector<4x1xi32>
    %15 = vector.extract_strided_slice %1 {offsets = [0, 0], sizes = [4, 1], strides = [1, 1]} : vector<4x8xf32> to vector<4x1xf32>
    %16 = vector.extract_strided_slice %1 {offsets = [0, 1], sizes = [4, 1], strides = [1, 1]} : vector<4x8xf32> to vector<4x1xf32>
    %17 = vector.extract_strided_slice %1 {offsets = [0, 2], sizes = [4, 1], strides = [1, 1]} : vector<4x8xf32> to vector<4x1xf32>
    %18 = vector.extract_strided_slice %1 {offsets = [0, 3], sizes = [4, 1], strides = [1, 1]} : vector<4x8xf32> to vector<4x1xf32>
    %19 = vector.extract_strided_slice %1 {offsets = [0, 4], sizes = [4, 1], strides = [1, 1]} : vector<4x8xf32> to vector<4x1xf32>
    %20 = vector.extract_strided_slice %1 {offsets = [0, 5], sizes = [4, 1], strides = [1, 1]} : vector<4x8xf32> to vector<4x1xf32>
    %21 = vector.extract_strided_slice %1 {offsets = [0, 6], sizes = [4, 1], strides = [1, 1]} : vector<4x8xf32> to vector<4x1xf32>
    %22 = vector.extract_strided_slice %1 {offsets = [0, 7], sizes = [4, 1], strides = [1, 1]} : vector<4x8xf32> to vector<4x1xf32>
    %23 = arith.cmpi eq, %7, %8 : vector<4x1xi32>
    %24 = arith.cmpi eq, %7, %9 : vector<4x1xi32>
    %25 = arith.cmpi eq, %7, %10 : vector<4x1xi32>
    %26 = arith.cmpi eq, %7, %11 : vector<4x1xi32>
    %27 = arith.cmpi eq, %7, %12 : vector<4x1xi32>
    %28 = arith.cmpi eq, %7, %13 : vector<4x1xi32>
    %29 = arith.cmpi eq, %7, %14 : vector<4x1xi32>
    %30 = arith.ori %23, %24 : vector<4x1xi1>
    %31 = arith.ori %25, %26 : vector<4x1xi1>
    %32 = arith.ori %27, %28 : vector<4x1xi1>
    %33 = arith.ori %30, %31 : vector<4x1xi1>
    %34 = arith.ori %32, %29 : vector<4x1xi1>
    %35 = arith.ori %33, %34 : vector<4x1xi1>
    %cst = arith.constant 0.000000e+00 : f32
    %36 = vector.broadcast %cst : f32 to vector<4x1xf32>
    %37 = arith.select %35, %36, %15 : vector<4x1xi1>, vector<4x1xf32>
    %38 = arith.cmpi eq, %8, %9 : vector<4x1xi32>
    %39 = arith.cmpi eq, %8, %10 : vector<4x1xi32>
    %40 = arith.cmpi eq, %8, %11 : vector<4x1xi32>
    %41 = arith.cmpi eq, %8, %12 : vector<4x1xi32>
    %42 = arith.cmpi eq, %8, %13 : vector<4x1xi32>
    %43 = arith.cmpi eq, %8, %14 : vector<4x1xi32>
    %44 = arith.ori %38, %39 : vector<4x1xi1>
    %45 = arith.ori %40, %41 : vector<4x1xi1>
    %46 = arith.ori %42, %43 : vector<4x1xi1>
    %47 = arith.ori %44, %45 : vector<4x1xi1>
    %48 = arith.ori %47, %46 : vector<4x1xi1>
    %cst_3 = arith.constant 0.000000e+00 : f32
    %49 = vector.broadcast %cst_3 : f32 to vector<4x1xf32>
    %50 = arith.select %48, %49, %16 : vector<4x1xi1>, vector<4x1xf32>
    %51 = arith.cmpi eq, %9, %10 : vector<4x1xi32>
    %52 = arith.cmpi eq, %9, %11 : vector<4x1xi32>
    %53 = arith.cmpi eq, %9, %12 : vector<4x1xi32>
    %54 = arith.cmpi eq, %9, %13 : vector<4x1xi32>
    %55 = arith.cmpi eq, %9, %14 : vector<4x1xi32>
    %56 = arith.ori %51, %52 : vector<4x1xi1>
    %57 = arith.ori %53, %54 : vector<4x1xi1>
    %58 = arith.ori %56, %57 : vector<4x1xi1>
    %59 = arith.ori %58, %55 : vector<4x1xi1>
    %cst_4 = arith.constant 0.000000e+00 : f32
    %60 = vector.broadcast %cst_4 : f32 to vector<4x1xf32>
    %61 = arith.select %59, %60, %17 : vector<4x1xi1>, vector<4x1xf32>
    %62 = arith.cmpi eq, %10, %11 : vector<4x1xi32>
    %63 = arith.cmpi eq, %10, %12 : vector<4x1xi32>
    %64 = arith.cmpi eq, %10, %13 : vector<4x1xi32>
    %65 = arith.cmpi eq, %10, %14 : vector<4x1xi32>
    %66 = arith.ori %62, %63 : vector<4x1xi1>
    %67 = arith.ori %64, %65 : vector<4x1xi1>
    %68 = arith.ori %66, %67 : vector<4x1xi1>
    %cst_5 = arith.constant 0.000000e+00 : f32
    %69 = vector.broadcast %cst_5 : f32 to vector<4x1xf32>
    %70 = arith.select %68, %69, %18 : vector<4x1xi1>, vector<4x1xf32>
    %71 = arith.cmpi eq, %11, %12 : vector<4x1xi32>
    %72 = arith.cmpi eq, %11, %13 : vector<4x1xi32>
    %73 = arith.cmpi eq, %11, %14 : vector<4x1xi32>
    %74 = arith.ori %71, %72 : vector<4x1xi1>
    %75 = arith.ori %74, %73 : vector<4x1xi1>
    %cst_6 = arith.constant 0.000000e+00 : f32
    %76 = vector.broadcast %cst_6 : f32 to vector<4x1xf32>
    %77 = arith.select %75, %76, %19 : vector<4x1xi1>, vector<4x1xf32>
    %78 = arith.cmpi eq, %12, %13 : vector<4x1xi32>
    %79 = arith.cmpi eq, %12, %14 : vector<4x1xi32>
    %80 = arith.ori %78, %79 : vector<4x1xi1>
    %cst_7 = arith.constant 0.000000e+00 : f32
    %81 = vector.broadcast %cst_7 : f32 to vector<4x1xf32>
    %82 = arith.select %80, %81, %20 : vector<4x1xi1>, vector<4x1xf32>
    %83 = arith.cmpi eq, %13, %14 : vector<4x1xi32>
    %cst_8 = arith.constant 0.000000e+00 : f32
    %84 = vector.broadcast %cst_8 : f32 to vector<4x1xf32>
    %85 = arith.select %83, %84, %21 : vector<4x1xi1>, vector<4x1xf32>
    %86 = tpu.iota {dimensions = array<i32: 1>} : vector<4x256xi32>
    %87 = vector.broadcast %7 : vector<4x1xi32> to vector<4x256xi32>
    %88 = arith.cmpi eq, %86, %87 : vector<4x256xi32>
    %cst_9 = arith.constant 0.000000e+00 : f32
    %89 = vector.shape_cast %37 : vector<4x1xf32> to vector<4x1xf32>
    %90 = vector.broadcast %89 : vector<4x1xf32> to vector<4x256xf32>
    %91 = vector.broadcast %cst_9 : f32 to vector<4x256xf32>
    %92 = arith.select %88, %90, %91 : vector<4x256xi1>, vector<4x256xf32>
    %93 = vector.broadcast %8 : vector<4x1xi32> to vector<4x256xi32>
    %94 = arith.cmpi eq, %86, %93 : vector<4x256xi32>
    %cst_10 = arith.constant 0.000000e+00 : f32
    %95 = vector.shape_cast %50 : vector<4x1xf32> to vector<4x1xf32>
    %96 = vector.broadcast %95 : vector<4x1xf32> to vector<4x256xf32>
    %97 = vector.broadcast %cst_10 : f32 to vector<4x256xf32>
    %98 = arith.select %94, %96, %97 : vector<4x256xi1>, vector<4x256xf32>
    %99 = vector.broadcast %9 : vector<4x1xi32> to vector<4x256xi32>
    %100 = arith.cmpi eq, %86, %99 : vector<4x256xi32>
    %cst_11 = arith.constant 0.000000e+00 : f32
    %101 = vector.shape_cast %61 : vector<4x1xf32> to vector<4x1xf32>
    %102 = vector.broadcast %101 : vector<4x1xf32> to vector<4x256xf32>
    %103 = vector.broadcast %cst_11 : f32 to vector<4x256xf32>
    %104 = arith.select %100, %102, %103 : vector<4x256xi1>, vector<4x256xf32>
    %105 = vector.broadcast %10 : vector<4x1xi32> to vector<4x256xi32>
    %106 = arith.cmpi eq, %86, %105 : vector<4x256xi32>
    %cst_12 = arith.constant 0.000000e+00 : f32
    %107 = vector.shape_cast %70 : vector<4x1xf32> to vector<4x1xf32>
    %108 = vector.broadcast %107 : vector<4x1xf32> to vector<4x256xf32>
    %109 = vector.broadcast %cst_12 : f32 to vector<4x256xf32>
    %110 = arith.select %106, %108, %109 : vector<4x256xi1>, vector<4x256xf32>
    %111 = vector.broadcast %11 : vector<4x1xi32> to vector<4x256xi32>
    %112 = arith.cmpi eq, %86, %111 : vector<4x256xi32>
    %cst_13 = arith.constant 0.000000e+00 : f32
    %113 = vector.shape_cast %77 : vector<4x1xf32> to vector<4x1xf32>
    %114 = vector.broadcast %113 : vector<4x1xf32> to vector<4x256xf32>
    %115 = vector.broadcast %cst_13 : f32 to vector<4x256xf32>
    %116 = arith.select %112, %114, %115 : vector<4x256xi1>, vector<4x256xf32>
    %117 = vector.broadcast %12 : vector<4x1xi32> to vector<4x256xi32>
    %118 = arith.cmpi eq, %86, %117 : vector<4x256xi32>
    %cst_14 = arith.constant 0.000000e+00 : f32
    %119 = vector.shape_cast %82 : vector<4x1xf32> to vector<4x1xf32>
    %120 = vector.broadcast %119 : vector<4x1xf32> to vector<4x256xf32>
    %121 = vector.broadcast %cst_14 : f32 to vector<4x256xf32>
    %122 = arith.select %118, %120, %121 : vector<4x256xi1>, vector<4x256xf32>
    %123 = vector.broadcast %13 : vector<4x1xi32> to vector<4x256xi32>
    %124 = arith.cmpi eq, %86, %123 : vector<4x256xi32>
    %cst_15 = arith.constant 0.000000e+00 : f32
    %125 = vector.shape_cast %85 : vector<4x1xf32> to vector<4x1xf32>
    %126 = vector.broadcast %125 : vector<4x1xf32> to vector<4x256xf32>
    %127 = vector.broadcast %cst_15 : f32 to vector<4x256xf32>
    %128 = arith.select %124, %126, %127 : vector<4x256xi1>, vector<4x256xf32>
    %129 = vector.broadcast %14 : vector<4x1xi32> to vector<4x256xi32>
    %130 = arith.cmpi eq, %86, %129 : vector<4x256xi32>
    %cst_16 = arith.constant 0.000000e+00 : f32
    %131 = vector.shape_cast %22 : vector<4x1xf32> to vector<4x1xf32>
    %132 = vector.broadcast %131 : vector<4x1xf32> to vector<4x256xf32>
    %133 = vector.broadcast %cst_16 : f32 to vector<4x256xf32>
    %134 = arith.select %130, %132, %133 : vector<4x256xi1>, vector<4x256xf32>
    %135 = arith.addf %92, %98 : vector<4x256xf32>
    %136 = arith.addf %104, %110 : vector<4x256xf32>
    %137 = arith.addf %116, %122 : vector<4x256xf32>
    %138 = arith.addf %128, %134 : vector<4x256xf32>
    %139 = arith.addf %135, %136 : vector<4x256xf32>
    %140 = arith.addf %137, %138 : vector<4x256xf32>
    %141 = arith.addf %139, %140 : vector<4x256xf32>
    %c0_17 = arith.constant 0 : index
    %c0_18 = arith.constant 0 : index
    %142 = vector.load %arg2[%c0_17, %c0_18] : memref<1x256xf32, #tpu.memory_space<vmem>>, vector<1x256xf32>
    %143 = vector.broadcast %142 : vector<1x256xf32> to vector<4x256xf32>
    %144 = arith.mulf %143, %141 : vector<4x256xf32>
    %cst_19 = arith.constant dense<0.000000e+00> : vector<4xf32>
    %145 = vector.multi_reduction <add>, %144, %cst_19 [1] : vector<4x256xf32> to vector<4xf32>
    %146 = vector.shape_cast %145 : vector<4xf32> to vector<4x1xf32>
    %c0_20 = arith.constant 0 : index
    %c0_21 = arith.constant 0 : index
    %147 = vector.load %arg3[%c0_20, %c0_21] : memref<1x1xf32, #tpu.memory_space<vmem>>, vector<1x1xf32>
    %148 = vector.broadcast %147 : vector<1x1xf32> to vector<4x1xf32>
    %149 = arith.addf %146, %148 : vector<4x1xf32>
    %c0_22 = arith.constant 0 : index
    %c0_23 = arith.constant 0 : index
    %150 = vector.load %arg4[%c0_22, %c0_23] : memref<4x1xf32, #tpu.memory_space<vmem>>, vector<4x1xf32>
    tpu.vector_store %arg4[%c0_22, %c0_23], %149 {strides = array<i32>} : memref<4x1xf32, #tpu.memory_space<vmem>>, vector<4x1xf32>,
    return
  }
}

</mosaic_0001>

<llo_original>
// kernel: tpu_custom_call.1
$region0: #{tpu_custom_call.1}
  #allocation0 [shape = 'u32[]', space=smem, size = 0x4, offset = 0x4, fixed_abs, tag = 'smem constant byte address 0x4 - core index']
  #allocation1 [shape = 'u32[144,128]{1,0:T(1,128)}', space=vmem, size = 0x12000, scoped, tag = 'internal scratch']
  #allocation2 [shape = 'f32[1,1]{1,0:T(1,128)S(1)}', space=vmem, size = 0x200, scoped, tag = 'scoped memory for tpu_custom_call.1']
  %s0 = inlined_call_operand.hbm [shape: s32[4,8], index: 0, kind: input, shape index: {}]
  %s1 = inlined_call_operand.vmem [shape: f32[4,8], index: 1, kind: input, shape index: {}]
  %s2 = inlined_call_operand.vmem [shape: f32[1,256], index: 2, kind: input, shape index: {}]
  %s3 = inlined_call_operand.<no memory space> [shape: f32[1,1], index: 3, kind: input, shape index: {}]
  %s4 = inlined_call_operand.vmem [shape: f32[4,1], index: 4, kind: output, shape index: {}]
  %s5 = sld [smem:[#allocation0]]
  $region30: #{tpu_custom_call.1} parent=0
    _
  %s7 = ssub.s32 1, %s5
  %s8 = scalar_select 0, %s7, %s5
  %v9 = vstv %s3
  %10 = vst [vmem:[#allocation2] sm:$0x1] %v9
  $region1: #{tpu_custom_call.1} parent=0
    #allocation3 [shape = 'u8[2048]{0}', space=vmem, size = 0x800, scoped, tag = 'input window, operand 0, single buffered']
    #allocation4 [shape = 's32[1]{0}', space=sflag, size = 0x4, scoped, tag = 'scoped memory for tpu_custom_call.1']
    %11 = vsyncpa [#allocation4], 0
    // Predicated region
    $region2: #{tpu_custom_call.1} parent=1 // pred_check
      _
    $region3: #{tpu_custom_call.1} parent=1 // pred_check_branch
      %13 = sbr.rel (0) target = $region5
    $region4: #{tpu_custom_call.1} parent=1 // pred_region
      %s15 = ssub.s32 64, 64
      %16 = vsyncadd [#allocation4], %s15
      %s18 = sshll.u32 [#allocation3], 4
      %s19 = int_to_ptr.vmem [resolvable:$true] %s18
      %21 = dma.hbm_to_vmem [thread:$0]  %s0, 64, %s19, [#allocation4]
    $region5: #{tpu_custom_call.1} parent=1 // pred_fallthru
      _
    // Predicated region
    $region6: #{tpu_custom_call.1} parent=1 // pred_check
      _
    $region7: #{tpu_custom_call.1} parent=1 // pred_check_branch
      %23 = sbr.rel (0) target = $region9
    $region8: #{tpu_custom_call.1} parent=1 // pred_region
      _
    $region9: #{tpu_custom_call.1} parent=1 // pred_fallthru
      _
    // Predicated region
    $region10: #{tpu_custom_call.1} parent=1 // pred_check
      _
    $region11: #{tpu_custom_call.1} parent=1 // pred_check_branch
      %25 = sbr.rel (0) target = $region13
    $region12: #{tpu_custom_call.1} parent=1 // pred_region
      _
    $region13: #{tpu_custom_call.1} parent=1 // pred_fallthru
      _
    // Predicated region
    $region14: #{tpu_custom_call.1} parent=1 // pred_check
      _
    $region15: #{tpu_custom_call.1} parent=1 // pred_check_branch
      %27 = sbr.rel (0) target = $region17
    $region16: #{tpu_custom_call.1} parent=1 // pred_region
      _
    $region17: #{tpu_custom_call.1} parent=1 // pred_fallthru
      _
    // Predicated region
    $region18: #{tpu_custom_call.1} parent=1 // pred_check
      _
    $region19: #{tpu_custom_call.1} parent=1 // pred_check_branch
      %29 = sbr.rel (0) target = $region21
    $region20: #{tpu_custom_call.1} parent=1 // pred_region
      %30 = dma.done [#allocation4], 64
    $region21: #{tpu_custom_call.1} parent=1 // pred_fallthru
      _
    %v31 = vld [vmem:[#allocation3] sm:$0xf]
    %v32 = vld [vmem:[%s1] sm:$0xf]
    %vm33 = vcmp.lt.s32.totalorder %v31, 0
    %v34 = vadd.s32 %v31, 256
    %v35 = vsel %vm33, %v34, %v31
    %36 = vrot.lane.b32.xlu0 %v35, 127
    %v37 = vpop.permute.xlu0 %36
    %vm38 = vcmp.eq.s32.totalorder %v35, %v37
    %39 = vrot.lane.b32.xlu0 %v35, 126
    %v40 = vpop.permute.xlu0 %39
    %vm41 = vcmp.eq.s32.totalorder %v35, %v40
    %42 = vrot.lane.b32.xlu0 %v35, 125
    %v43 = vpop.permute.xlu0 %42
    %vm44 = vcmp.eq.s32.totalorder %v35, %v43
    %45 = vrot.lane.b32.xlu0 %v35, 124
    %v46 = vpop.permute.xlu0 %45
    %vm47 = vcmp.eq.s32.totalorder %v35, %v46
    %48 = vrot.lane.b32.xlu0 %v35, 123
    %v49 = vpop.permute.xlu0 %48
    %vm50 = vcmp.eq.s32.totalorder %v35, %v49
    %51 = vrot.lane.b32.xlu0 %v35, 122
    %v52 = vpop.permute.xlu0 %51
    %vm53 = vcmp.eq.s32.totalorder %v35, %v52
    %54 = vrot.lane.b32.xlu0 %v35, 121
    %v55 = vpop.permute.xlu0 %54
    %vm56 = vcmp.eq.s32.totalorder %v35, %v55
    %vm57 = vmor %vm38, %vm41
    %vm58 = vmor %vm44, %vm47
    %vm59 = vmor %vm50, %vm53
    %vm60 = vmor %vm57, %vm58
    %vm61 = vmor %vm59, %vm56
    %vm62 = vmor %vm60, %vm61
    %v63 = vsel %vm62, 0.0, %v32
    %vm64 = vmor %vm60, %vm59
    %v65 = vsel %vm64, 0.0, %v32
    %vm66 = vmor %vm60, %vm50
    %v67 = vsel %vm66, 0.0, %v32
    %v68 = vsel %vm60, 0.0, %v32
    %vm69 = vmor %vm57, %vm44
    %v70 = vsel %vm69, 0.0, %v32
    %v71 = vsel %vm57, 0.0, %v32
    %v72 = vsel %vm38, 0.0, %v32
    %v73 = vlaneseq
    %v74 = vand.u32 %v73, 127
    %v75 = vadd.s32 %v74, 128
    %76 = vset.pattern.permute.xlu0 0
    %77 = vperm.xlu0 %76, %v35
    %v78 = vpop.permute.xlu0 %77
    %vm79 = vcmp.eq.s32.totalorder %v74, %v78
    %vm80 = vcmp.eq.s32.totalorder %v75, %v78
    %82 = vset.pattern.permute.xlu0 0
    %83 = vperm.xlu0 %82, %v63
    %v84 = vpop.permute.xlu0 %83
    %v86 = vsel %vm79, %v84, 0.0
    %v87 = vsel %vm80, %v84, 0.0
    %88 = vset.pattern.permute.xlu0 1
    %89 = vperm.xlu0 %88, %v35
    %v90 = vpop.permute.xlu0 %89
    %vm91 = vcmp.eq.s32.totalorder %v74, %v90
    %vm92 = vcmp.eq.s32.totalorder %v75, %v90
    %94 = vset.pattern.permute.xlu0 1
    %95 = vperm.xlu0 %94, %v65
    %v96 = vpop.permute.xlu0 %95
    %v98 = vsel %vm91, %v96, 0.0
    %v99 = vsel %vm92, %v96, 0.0
    %100 = vset.pattern.permute.xlu0 2
    %101 = vperm.xlu0 %100, %v35
    %v102 = vpop.permute.xlu0 %101
    %vm103 = vcmp.eq.s32.totalorder %v74, %v102
    %vm104 = vcmp.eq.s32.totalorder %v75, %v102
    %106 = vset.pattern.permute.xlu0 2
    %107 = vperm.xlu0 %106, %v67
    %v108 = vpop.permute.xlu0 %107
    %v110 = vsel %vm103, %v108, 0.0
    %v111 = vsel %vm104, %v108, 0.0
    %112 = vset.pattern.permute.xlu0 3
    %113 = vperm.xlu0 %112, %v35
    %v114 = vpop.permute.xlu0 %113
    %vm115 = vcmp.eq.s32.totalorder %v74, %v114
    %vm116 = vcmp.eq.s32.totalorder %v75, %v114
    %118 = vset.pattern.permute.xlu0 3
    %119 = vperm.xlu0 %118, %v68
    %v120 = vpop.permute.xlu0 %119
    %v122 = vsel %vm115, %v120, 0.0
    %v123 = vsel %vm116, %v120, 0.0
    %124 = vset.pattern.permute.xlu0 4
    %125 = vperm.xlu0 %124, %v35
    %v126 = vpop.permute.xlu0 %125
    %vm127 = vcmp.eq.s32.totalorder %v74, %v126
    %vm128 = vcmp.eq.s32.totalorder %v75, %v126
    %130 = vset.pattern.permute.xlu0 4
    %131 = vperm.xlu0 %130, %v70
    %v132 = vpop.permute.xlu0 %131
    %v134 = vsel %vm127, %v132, 0.0
    %v135 = vsel %vm128, %v132, 0.0
    %136 = vset.pattern.permute.xlu0 5
    %137 = vperm.xlu0 %136, %v35
    %v138 = vpop.permute.xlu0 %137
    %vm139 = vcmp.eq.s32.totalorder %v74, %v138
    %vm140 = vcmp.eq.s32.totalorder %v75, %v138
    %142 = vset.pattern.permute.xlu0 5
    %143 = vperm.xlu0 %142, %v71
    %v144 = vpop.permute.xlu0 %143
    %v146 = vsel %vm139, %v144, 0.0
    %v147 = vsel %vm140, %v144, 0.0
    %148 = vset.pattern.permute.xlu0 6
    %149 = vperm.xlu0 %148, %v35
    %v150 = vpop.permute.xlu0 %149
    %vm151 = vcmp.eq.s32.totalorder %v74, %v150
    %vm152 = vcmp.eq.s32.totalorder %v75, %v150
    %154 = vset.pattern.permute.xlu0 6
    %155 = vperm.xlu0 %154, %v72
    %v156 = vpop.permute.xlu0 %155
    %v158 = vsel %vm151, %v156, 0.0
    %v159 = vsel %vm152, %v156, 0.0
    %160 = vset.pattern.permute.xlu0 7
    %161 = vperm.xlu0 %160, %v35
    %v162 = vpop.permute.xlu0 %161
    %vm163 = vcmp.eq.s32.totalorder %v74, %v162
    %vm164 = vcmp.eq.s32.totalorder %v75, %v162
    %166 = vset.pattern.permute.xlu0 7
    %167 = vperm.xlu0 %166, %v32
    %v168 = vpop.permute.xlu0 %167
    %v170 = vsel %vm163, %v168, 0.0
    %v171 = vsel %vm164, %v168, 0.0
    %v172 = vadd.f32 %v86, %v98
    %v173 = vadd.f32 %v87, %v99
    %v174 = vadd.f32 %v110, %v122
    %v175 = vadd.f32 %v111, %v123
    %v176 = vadd.f32 %v134, %v146
    %v177 = vadd.f32 %v135, %v147
    %v178 = vadd.f32 %v158, %v170
    %v179 = vadd.f32 %v159, %v171
    %v180 = vadd.f32 %v172, %v174
    %v181 = vadd.f32 %v173, %v175
    %v182 = vadd.f32 %v176, %v178
    %v183 = vadd.f32 %v177, %v179
    %v184 = vadd.f32 %v180, %v182
    %v185 = vadd.f32 %v181, %v183
    %v186 = vld [vmem:[%s2] sm:$0x3]
    %v188 = vlaneseq
    %v189 = vshrl.u32 %v188, 7
    %v190 = vsub.s32 0, %v189
    %v191 = vrot.slane %v186, %v190
    %v192 = vlaneseq
    %v193 = vshrl.u32 %v192, 7
    %v194 = vsub.s32 1, %v193
    %v195 = vrot.slane %v186, %v194
    %v198 = vmul.f32 %v191, %v184
    %v199 = vmul.f32 %v195, %v185
    %vm200 = vcmask 1043456
    %v201 = vsel %vm200, %v198, 0.0
    %v202 = vsel %vm200, %v199, 0.0
    %v203 = vadd.f32 %v201, %v202
    %204 = vadd.xlane.f32.xlu0 %v203
    %v205 = vpop.xlane.xlu0 %204
    %v206 = vld [vmem:[#allocation2] sm:$0x1]
    %v208 = vlaneseq
    %v209 = vshrl.u32 %v208, 7
    %v210 = vsub.s32 0, %v209
    %v211 = vrot.slane %v206, %v210
    %v213 = vadd.f32 %v205, %v211
    %vm214 = vcmask 3072
    %215 = vst.msk [vmem:[%s4] sm:$0xf] %vm214, %v213
    // Predicated region
    $region22: #{tpu_custom_call.1} parent=1 // pred_check
      _
    $region23: #{tpu_custom_call.1} parent=1 // pred_check_branch
      %217 = sbr.rel (0) target = $region25
    $region24: #{tpu_custom_call.1} parent=1 // pred_region
      _
    $region25: #{tpu_custom_call.1} parent=1 // pred_fallthru
      _
    // Predicated region
    $region26: #{tpu_custom_call.1} parent=1 // pred_check
      _
    $region27: #{tpu_custom_call.1} parent=1 // pred_check_branch
      %219 = sbr.rel (0) target = $region29
    $region28: #{tpu_custom_call.1} parent=1 // pred_region
      _
    $region29: #{tpu_custom_call.1} parent=1 // pred_fallthru
      _
    %220 = vsyncpa [#allocation4], 1

</llo_original>
